<compile_context>
chip_gen: v5e
topology: v5e:2x2
jax: 0.10.0
libtpu: 0.0.40
codegen_flags: <defaults>
</compile_context>

<pallas_src>
import jax
import jax.numpy as jnp
from jax.experimental import pallas as pl
from jax.experimental.pallas import tpu as pltpu

EPSILON = 1e-5
SOFTMAX_DIM = 1  # sequence axis of the (B, S, H) input


def masked_softmax_kernel(x_ref, mask_ref, out_ref):
    # x_ref:    (TB, S, TH) tile of the input
    # mask_ref: (TB, S, 1)  mask tile (unsqueezed in the wrapper), VMEM-resident
    #           across all H tiles of these batch rows (index_map ignores h)
    # out_ref:  (TB, S, TH) tile of the output
    xf = x_ref[...].astype(jnp.float32)
    mf = mask_ref[...].astype(jnp.float32)
    exps = jnp.exp(xf)                      # EUP (free slot on a mem-bound op)
    masked = exps * mf                      # broadcast over TH lanes
    sums = jnp.sum(masked, axis=SOFTMAX_DIM, keepdims=True) + EPSILON  # (TB,1,TH)
    inv = 1.0 / sums                        # exact: only TB*TH divides
    out_ref[...] = (masked * inv).astype(out_ref.dtype)


def _choose_tiles(B, S, H, x_itemsize, *, target_block_bytes=2 << 20,
                  min_grid_steps=8):
    """Pick (TB, TH, nB, nH) so one x block is ~target_block_bytes.

    TH is lane-dense (multiple of 128) whenever H >= 128; otherwise the only
    legal choice is the full H (lane-sparse vst.msk stores, documented cost).
    TB packs batch rows per step to amortize per-step overhead for short S,
    then is shrunk (if possible) so the grid has enough steps to feed two
    TensorCores (v7x) and the software pipeline.
    """
    if H < 128:
        TH = H                                   # full dim; lanes 25%-ish used
    else:
        cap = max(128, (target_block_bytes // max(1, S * x_itemsize)) // 128 * 128)
        TH = min((H // 128) * 128, cap, 2048)    # lane-dense, <= H
    nH = pl.cdiv(H, TH)

    blk_bytes = S * TH * x_itemsize
    TB = max(1, min(B, target_block_bytes // max(1, blk_bytes)))
    while TB > 1 and pl.cdiv(B, TB) * nH < min_grid_steps:
        TB = max(1, TB // 2)
    nB = pl.cdiv(B, TB)
    return TB, TH, nB, nH


def _vmem_limit_bytes(TB, S, TH, x_itemsize, mask_itemsize):
    """Scoped-VMEM limit for the chosen block: double-buffered I/O + f32 temps."""
    io_blk = TB * S * TH * x_itemsize          # one x block (== one out block)
    m_blk = TB * S * 1 * mask_itemsize
    f32_blk = TB * S * TH * 4                  # exps / masked / pre-cast result
    est = 2 * (2 * io_blk + m_blk) + 3 * f32_blk
    # >= 32 MiB (safe everywhere), <= 48 MiB (headroom under v7x's 64 MiB phys).
    return int(min(48 << 20, max(32 << 20, est * 5 // 4)))


def masked_softmax(x: jax.Array, mask: jax.Array, *,
                   force_pallas: bool = False,
                   min_pallas_elements: int = 1 << 16) -> jax.Array:
    """x: (B, S, H) float; mask: (B, S) {0,1} (bool or any numeric dtype)."""
    B, S, H = x.shape

    # Tiny problems: pallas_call fixed overhead dominates -> fused XLA path.
    if (not force_pallas) and (B * S * H) < min_pallas_elements:
        return masked_softmax_ref(x, mask)

    # Keep the mask in a narrow dtype; cast to f32 inside the kernel.
    mask3 = mask.reshape(B, S, 1)
    if mask3.dtype == jnp.bool_:
        mask3 = mask3.astype(jnp.int8)

    x_itemsize = jnp.dtype(x.dtype).itemsize
    mask_itemsize = jnp.dtype(mask3.dtype).itemsize

    TB, TH, nB, nH = _choose_tiles(B, S, H, x_itemsize)

    grid_spec = pltpu.PrefetchScalarGridSpec(
        num_scalar_prefetch=0,
        grid=(nB, nH),  # H innermost -> mask block stays resident per batch tile
        in_specs=[
            pl.BlockSpec((TB, S, TH), lambda b, h: (b, 0, h)),
            pl.BlockSpec((TB, S, 1), lambda b, h: (b, 0, 0)),
        ],
        out_specs=pl.BlockSpec((TB, S, TH), lambda b, h: (b, 0, h)),
    )

    cost = pl.CostEstimate(
        flops=3 * B * S * H,                 # mask-mul + sum + normalize-mul
        transcendentals=B * S * H,           # exp
        bytes_accessed=2 * B * S * H * x_itemsize + B * S * mask_itemsize,
    )

    return pl.pallas_call(
        masked_softmax_kernel,
        out_shape=jax.ShapeDtypeStruct((B, S, H), x.dtype),
        grid_spec=grid_spec,
        compiler_params=pltpu.CompilerParams(
            dimension_semantics=("parallel", "parallel"),
            vmem_limit_bytes=_vmem_limit_bytes(TB, S, TH, x_itemsize,
                                               mask_itemsize),
        ),
        cost_estimate=cost,
    )(x, mask3)


def masked_softmax_ref(x, mask):
    """Pure-JAX reference matching the PyTorch forward exactly."""
    exps = jnp.exp(x.astype(jnp.float32))
    masked_exps = exps * mask.astype(jnp.float32)[..., None]
    masked_sums = jnp.sum(masked_exps, axis=SOFTMAX_DIM, keepdims=True) + EPSILON
    return (masked_exps / masked_sums).astype(x.dtype)


if __name__ == "__main__":
    # MaskedSoftmax has no parameters; only deterministic inputs are needed.
    key = jax.random.PRNGKey(0)
    k1, k2, k3, k4, k5, k6 = jax.random.split(key, 6)

    # 1) Encoder-like tiny shape (H < 128 -> full-H, lane-sparse block).
    #    Force the Pallas path so the kernel itself is exercised on TPU.
    B, S, H = 2, 8, 32
    x = jax.random.normal(k1, (B, S, H), dtype=jnp.float32)
    m1 = jax.random.bernoulli(k2, 0.7, (B, S)).astype(jnp.float32)
    out = jax.block_until_ready(masked_softmax(x, m1, force_pallas=True))
    ref = masked_softmax_ref(x, m1)
    assert out.shape == (B, S, H)
    assert jnp.allclose(out, ref, atol=1e-5, rtol=1e-5), "mismatch (small, pallas)"

    # Default dispatch for a tiny problem uses the fused pure-JAX path.
    out_d = jax.block_until_ready(masked_softmax(x, m1))
    assert jnp.allclose(out_d, ref, atol=1e-5, rtol=1e-5), "mismatch (small, dispatch)"

    # 2) Lane-dense H (multiple of 128), f32, batch-tiled grid.
    B2, S2, H2 = 2, 16, 256
    x2 = jax.random.normal(k3, (B2, S2, H2), dtype=jnp.float32)
    m2 = jax.random.bernoulli(k4, 0.5, (B2, S2)).astype(jnp.float32)
    out2 = jax.block_until_ready(masked_softmax(x2, m2, force_pallas=True))
    ref2 = masked_softmax_ref(x2, m2)
    assert out2.shape == (B2, S2, H2)
    assert jnp.allclose(out2, ref2, atol=1e-5, rtol=1e-5), "mismatch (tiled f32)"

    # 3) Awkward H (not a multiple of 128 -> cdiv-padded last H block),
    #    bf16 I/O, bool mask (passed as int8, cast to f32 in-kernel).
    B3, S3, H3 = 4, 16, 320
    x3 = jax.random.normal(k5, (B3, S3, H3), dtype=jnp.bfloat16)
    m3 = jax.random.bernoulli(k6, 0.6, (B3, S3))  # bool
    out3 = jax.block_until_ready(masked_softmax(x3, m3, force_pallas=True))
    ref3 = masked_softmax_ref(x3, m3)
    assert out3.shape == (B3, S3, H3)
    assert jnp.allclose(out3.astype(jnp.float32), ref3.astype(jnp.float32),
                        atol=2e-2, rtol=2e-2), "mismatch (padded-H bf16)"

    print("KERNEL_OK")
</pallas_src>

<mosaic_0001>
module attributes {stable_mosaic.version = 11 : i64} {
  func.func @masked_softmax_kernel(%arg0: i32, %arg1: i32, %arg2: memref<1x8x32xf32, #tpu.memory_space<vmem>>, %arg3: memref<1x8x1xf32, #tpu.memory_space<vmem>>, %arg4: memref<1x8x32xf32, #tpu.memory_space<vmem>>) attributes {dimension_semantics = [#tpu.dimension_semantics<parallel>, #tpu.dimension_semantics<parallel>], iteration_bounds = array<i64: 2, 1>, scalar_prefetch = 0 : i64, scratch_operands = 0 : i64, tpu.core_type = #tpu.core_type<tc>, window_params = [{transform_indices = @transform_0, window_bounds = array<i64: 1, 8, 32>}, {transform_indices = @transform_1, window_bounds = array<i64: 1, 8, 1>}, {transform_indices = @transform_2, window_bounds = array<i64: 1, 8, 32>}]} {
    %c0 = arith.constant 0 : index
    %c0_0 = arith.constant 0 : index
    %c0_1 = arith.constant 0 : index
    %0 = vector.load %arg2[%c0, %c0_0, %c0_1] : memref<1x8x32xf32, #tpu.memory_space<vmem>>, vector<1x8x32xf32>
    %c0_2 = arith.constant 0 : index
    %c0_3 = arith.constant 0 : index
    %c0_4 = arith.constant 0 : index
    %1 = vector.load %arg3[%c0_2, %c0_3, %c0_4] : memref<1x8x1xf32, #tpu.memory_space<vmem>>, vector<1x8x1xf32>
    %2 = math.exp %0 : vector<1x8x32xf32>
    %3 = vector.broadcast %1 : vector<1x8x1xf32> to vector<1x8x32xf32>
    %4 = arith.mulf %2, %3 : vector<1x8x32xf32>
    %cst = arith.constant dense<0.000000e+00> : vector<1x32xf32>
    %5 = vector.multi_reduction <add>, %4, %cst [1] : vector<1x8x32xf32> to vector<1x32xf32>
    %6 = vector.shape_cast %5 : vector<1x32xf32> to vector<1x1x32xf32>
    %cst_5 = arith.constant 9.99999974E-6 : f32
    %7 = vector.broadcast %cst_5 : f32 to vector<1x1x32xf32>
    %8 = arith.addf %6, %7 : vector<1x1x32xf32>
    %cst_6 = arith.constant 1.000000e+00 : f32
    %9 = vector.broadcast %cst_6 : f32 to vector<1x1x32xf32>
    %10 = arith.divf %9, %8 : vector<1x1x32xf32>
    %11 = vector.broadcast %10 : vector<1x1x32xf32> to vector<1x8x32xf32>
    %12 = arith.mulf %4, %11 : vector<1x8x32xf32>
    %c0_7 = arith.constant 0 : index
    %c0_8 = arith.constant 0 : index
    %c0_9 = arith.constant 0 : index
    %13 = vector.load %arg4[%c0_7, %c0_8, %c0_9] : memref<1x8x32xf32, #tpu.memory_space<vmem>>, vector<1x8x32xf32>
    tpu.vector_store %arg4[%c0_7, %c0_8, %c0_9], %12 {strides = array<i32>} : memref<1x8x32xf32, #tpu.memory_space<vmem>>, vector<1x8x32xf32>,
    return
  }
  func.func @transform_0(%arg0: i32, %arg1: i32) -> (i32, i32, i32) {
    %c0_i32 = arith.constant 0 : i32
    %c0_i32_0 = arith.constant 0 : i32
    return %arg0, %c0_i32, %arg1 : i32, i32, i32
  }
  func.func @transform_1(%arg0: i32, %arg1: i32) -> (i32, i32, i32) {
    %c0_i32 = arith.constant 0 : i32
    %c0_i32_0 = arith.constant 0 : i32
    %c0_i32_1 = arith.constant 0 : i32
    return %arg0, %c0_i32, %c0_i32_0 : i32, i32, i32
  }
  func.func @transform_2(%arg0: i32, %arg1: i32) -> (i32, i32, i32) {
    %c0_i32 = arith.constant 0 : i32
    %c0_i32_0 = arith.constant 0 : i32
    return %arg0, %c0_i32, %arg1 : i32, i32, i32
  }
}

</mosaic_0001>

<llo_original>
// kernel: tpu_custom_call.1
$region0: #{tpu_custom_call.1}
  #allocation0 [shape = 'u32[]', space=smem, size = 0x4, offset = 0x4, fixed_abs, tag = 'smem constant byte address 0x4 - core index']
  #allocation1 [shape = 'u32[72,128]{1,0:T(1,128)}', space=vmem, size = 0x9000, scoped, tag = 'internal scratch']
  %s0 = inlined_call_operand.vmem [shape: f32[2,8,32], index: 0, kind: input, shape index: {}]
  %s1 = inlined_call_operand.vmem [shape: f32[2,8,1], index: 1, kind: input, shape index: {}]
  %s2 = inlined_call_operand.hbm [shape: f32[2,8,32], index: 2, kind: output, shape index: {}]
  %s3 = sld [smem:[#allocation0]]
  $region41: #{tpu_custom_call.1} parent=0
    _
  %s5 = ssub.s32 1, %s3
  %s6 = scalar_select 0, %s5, %s3
  $region1: #{tpu_custom_call.1} parent=0
    #allocation2 [shape = 'u8[8192]{0}', space=vmem, size = 0x2000, scoped, tag = 'output window, operand 0']
    #allocation3 [shape = 's32[2]{0}', space=sflag, size = 0x8, scoped, tag = 'scoped memory for tpu_custom_call.1']
    %7 = vsyncpa [#allocation3], 0
    %s8 = scalar_lea.sflag [#allocation3], 1
    %9 = vsyncpa %s8, 0
    loop: start=0, step=1, limit=4
    $region2: #{tpu_custom_call.1} parent=1 // loop_pre_header
      _
    $region3: #{tpu_custom_call.1} parent=1 // loop_header
      %s11 = sphi 0, %s15
      %p12 = scmp.ge.s32.totalorder %s11, 4
      %s18 = sphi 0, %s30
      %s19 = sphi 0, %s26
      %s20 = sphi 0, %s18
      %s21 = sphi 0, %s19
      %s22 = sphi 0, %s20
      %s23 = sphi 0, %s21
      %s35 = sphi 0, %s37
      %s38 = sphi 0, %s35
      %s39 = sphi 0, %s38
      %s55 = sphi 0, %s39
      %s61 = sphi 0, %s63
      %s64 = sphi 0, %s61
      %s65 = sphi 0, %s64
      %s81 = sphi 0, %s65
      %s89 = sphi 0, %s91
      %s92 = sphi 0, %s89
      %s93 = sphi 0, %s92
      %s109 = sphi 0, %s93
    $region4: #{tpu_custom_call.1} parent=1 // loop_header_branch
      %14 = sbr.rel (%p12) target = $region8
    $region5: #{tpu_custom_call.1} parent=1 // loop_body
      %s16 = ssub.s32 %s11, 1
      %s17 = ssub.s32 %s11, 2
      %s24 = sadd.s32 1, %s19
      %p25 = scmp.ge.s32.totalorder %s24, 1
      %s26 = scalar_select %p25, 0, %s24
      %s27 = sadd.s32 1, %s18
      %s28 = scalar_select %p25, %s27, %s18
      %p29 = scmp.ge.s32.totalorder %s28, 2
      %s30 = scalar_select %p29, 0, %s28
      %s31 = ssub.s32 %s18, %s30
      %s32 = ssub.s32 %s19, %s26
      %s33 = sor.u32 %s31, %s32
      %p34 = scmp.eq.s32.totalorder %s33, 0
      %s36 = sadd.s32 %s35, 1
      %s37 = scalar_select %p34, %s35, %s36
      %p40 = pneg %p34
      %p41 = scmp.eq.s32.totalorder %s11, 1
      %p42 = por %p40, %p41
      %p43 = scmp.ne.s32.totalorder %s35, %s38
      %p44 = scmp.eq.s32.totalorder %s11, 0
      %p45 = por %p43, %p44
      %p46 = scmp.ne.s32.totalorder %s35, %s38
      %p47 = scmp.eq.s32.totalorder %s16, 1
      %p48 = por %p46, %p47
      %p49 = scmp.ne.s32.totalorder %s38, %s39
      %p50 = scmp.eq.s32.totalorder %s16, 0
      %p51 = por %p49, %p50
      %p52 = scmp.ne.s32.totalorder %s38, %s39
      %p53 = scmp.eq.s32.totalorder %s17, 1
      %p54 = por %p52, %p53
      %p56 = scmp.ne.s32.totalorder %s39, %s55
      %p57 = scmp.eq.s32.totalorder %s17, 0
      %p58 = por %p56, %p57
      %s59 = ssub.s32 %s18, %s30
      %p60 = scmp.eq.s32.totalorder %s59, 0
      %s62 = sadd.s32 %s61, 1
      %s63 = scalar_select %p60, %s61, %s62
      %p66 = pneg %p60
      %p67 = scmp.eq.s32.totalorder %s11, 1
      %p68 = por %p66, %p67
      %p69 = scmp.ne.s32.totalorder %s61, %s64
      %p70 = scmp.eq.s32.totalorder %s11, 0
      %p71 = por %p69, %p70
      %p72 = scmp.ne.s32.totalorder %s61, %s64
      %p73 = scmp.eq.s32.totalorder %s16, 1
      %p74 = por %p72, %p73
      %p75 = scmp.ne.s32.totalorder %s64, %s65
      %p76 = scmp.eq.s32.totalorder %s16, 0
      %p77 = por %p75, %p76
      %p78 = scmp.ne.s32.totalorder %s64, %s65
      %p79 = scmp.eq.s32.totalorder %s17, 1
      %p80 = por %p78, %p79
      %p82 = scmp.ne.s32.totalorder %s65, %s81
      %p83 = scmp.eq.s32.totalorder %s17, 0
      %p84 = por %p82, %p83
      %s85 = ssub.s32 %s18, %s30
      %s86 = ssub.s32 %s19, %s26
      %s87 = sor.u32 %s85, %s86
      %p88 = scmp.eq.s32.totalorder %s87, 0
      %s90 = sadd.s32 %s89, 1
      %s91 = scalar_select %p88, %s89, %s90
      %p94 = pneg %p88
      %p95 = scmp.eq.s32.totalorder %s11, 1
      %p96 = por %p94, %p95
      %p97 = scmp.ne.s32.totalorder %s89, %s92
      %p98 = scmp.eq.s32.totalorder %s11, 0
      %p99 = por %p97, %p98
      %p100 = scmp.ne.s32.totalorder %s89, %s92
      %p101 = scmp.eq.s32.totalorder %s16, 1
      %p102 = por %p100, %p101
      %p103 = scmp.ne.s32.totalorder %s92, %s93
      %p104 = scmp.eq.s32.totalorder %s16, 0
      %p105 = por %p103, %p104
      %p106 = scmp.ne.s32.totalorder %s92, %s93
      %p107 = scmp.eq.s32.totalorder %s17, 1
      %p108 = por %p106, %p107
      %p110 = scmp.ne.s32.totalorder %s93, %s109
      %p111 = scmp.eq.s32.totalorder %s17, 0
      %p112 = por %p110, %p111
      %p113 = scmp.le.s32.totalorder 1, %s11
      %p114 = scmp.lt.s32.totalorder %s11, 3
      %p115 = pnand %p113, %p114
      %p116 = pneg %p115
      // Predicated region
      $region9: #{tpu_custom_call.1} parent=5 // pred_check
        _
      $region10: #{tpu_custom_call.1} parent=5 // pred_check_branch
        %118 = sbr.rel (%p115) target = $region12
      $region11: #{tpu_custom_call.1} parent=5 // pred_region
        %s119 = ssub.s32 %s11, 1
      $region12: #{tpu_custom_call.1} parent=5 // pred_fallthru
        _
      %p120 = scmp.lt.s32.totalorder %s11, 2
      // Predicated region
      $region13: #{tpu_custom_call.1} parent=5 // pred_check
        %p121 = pneg %p120
      $region14: #{tpu_custom_call.1} parent=5 // pred_check_branch
        %123 = sbr.rel (%p121) target = $region16
      $region15: #{tpu_custom_call.1} parent=5 // pred_region
        // Predicated region
        $region17: #{tpu_custom_call.1} parent=15 // pred_check
          %p124 = pneg %p45
        $region18: #{tpu_custom_call.1} parent=15 // pred_check_branch
          %126 = sbr.rel (%p124) target = $region20
        $region19: #{tpu_custom_call.1} parent=15 // pred_region
          %p127 = scmp.lt.s32.totalorder %s18, 1
          %s128 = scalar_select %p127, %s18, 1
          %p129 = scmp.lt.s32.totalorder %s19, 0
          %s130 = scalar_select %p129, %s19, 0
          %s131 = sadd.s32 %s130, %s128
          %s132 = smul.addr %s131, 8
          %s133 = scalar_lea.vmem %s0, %s132
        $region20: #{tpu_custom_call.1} parent=15 // pred_fallthru
          _
        // Predicated region
        $region21: #{tpu_custom_call.1} parent=15 // pred_check
          %p134 = pneg %p71
        $region22: #{tpu_custom_call.1} parent=15 // pred_check_branch
          %136 = sbr.rel (%p134) target = $region24
        $region23: #{tpu_custom_call.1} parent=15 // pred_region
          %p137 = scmp.lt.s32.totalorder %s18, 1
          %s138 = scalar_select %p137, %s18, 1
          %s139 = smul.addr %s138, 8
          %s140 = scalar_lea.vmem %s1, %s139
        $region24: #{tpu_custom_call.1} parent=15 // pred_fallthru
          _
      $region16: #{tpu_custom_call.1} parent=5 // pred_fallthru
        _
      %p141 = scmp.le.s32.totalorder 1, %s11
      %p142 = scmp.lt.s32.totalorder %s11, 3
      %p143 = pnand %p141, %p142
      %p144 = pneg %p143
      // Predicated region
      $region25: #{tpu_custom_call.1} parent=5 // pred_check
        _
      $region26: #{tpu_custom_call.1} parent=5 // pred_check_branch
        %146 = sbr.rel (%p143) target = $region28
      $region27: #{tpu_custom_call.1} parent=5 // pred_region
        %s147 = ssub.s32 %s11, 1
        %p148 = scmp.lt.s32.totalorder %s20, 1
        %s149 = scalar_select %p148, %s20, 1
        %p150 = scmp.lt.s32.totalorder %s21, 0
        %s151 = scalar_select %p150, %s21, 0
        %s152 = sadd.s32 %s151, %s149
        %s153 = smul.addr %s152, 8
        %s154 = scalar_lea.vmem %s0, %s153
        %p155 = pneg %p51
        %p156 = pneg %p48
        %p157 = scmp.lt.s32.totalorder %s20, 1
        %s158 = scalar_select %p157, %s20, 1
        %s159 = smul.addr %s158, 8
        %s160 = scalar_lea.vmem %s1, %s159
        %p161 = pneg %p77
        %p162 = pneg %p74
        %p163 = pneg %p105
        %p164 = pneg %p102
        %s165 = sand.u32 %s92, 1
        %s166 = scalar_lea.sflag [#allocation3], %s165
        %s167 = sand.u32 %s92, 1
        %s168 = smul.addr %s167, 8
        %s169 = scalar_lea.vmem [#allocation2], %s168
        %p170 = scmp.lt.s32.totalorder %s20, 1
        %s171 = scalar_select %p170, %s20, 1
        %p172 = scmp.lt.s32.totalorder %s21, 0
        %s173 = scalar_select %p172, %s21, 0
        %s174 = sadd.s32 %s173, %s171
        %s175 = smul.addr %s174, 8
        %s176 = scalar_lea.vmem %s0, %s175
        %p177 = scmp.lt.s32.totalorder %s20, 1
        %s178 = scalar_select %p177, %s20, 1
        %s179 = smul.addr %s178, 8
        %s180 = scalar_lea.vmem %s1, %s179
        %v181 = vld [vmem:[%s176] sm:$0xff]
        %v182 = vld [vmem:[%s180] sm:$0xff]
        %v183 = vmul.f32 %v181, 1.442695
        %v184 = vpow.pop %v183
        %186 = vset.pattern.permute.xlu0 0
        %187 = vperm.xlu0 %186, %v182
        %v188 = vpop.permute.xlu0 %187
        %v190 = vmul.f32 %v184, %v188
        %vm191 = vcmask 261120
        %v192 = vsel %vm191, %v190, 0.0
        %v193 = vrot.slane %v192, 4
        %v194 = vadd.f32 %v192, %v193
        %v195 = vrot.slane %v194, 2
        %v196 = vadd.f32 %v194, %v195
        %v197 = vrot.slane %v196, 1
        %v198 = vadd.f32 %v196, %v197
        %v199 = vadd.f32 %v198, 1e-05
        %v200 = vrcp.pop %v199
        %v201 = vmul.f32 %v199, %v200
        %v202 = vsub.f32 1.0, %v201
        %v203 = vmul.f32 %v200, %v202
        %v204 = vadd.f32 %v200, %v203
        %vm205 = vweird.f32 %v199
        %vm206 = vweird.f32 %v200
        %vm207 = vmor %vm205, %vm206
        %v208 = vsel %vm207, %v200, %v204
        %v209 = vand.u32 2147483647, %v199
        %vm210 = vcmp.eq.f32.partialorder %v209, 8.507059e+37
        %v211 = vand.u32 %v199, 2147483648
        %v212 = vor.u32 1.1754944e-38, %v211
        %v213 = vsel %vm210, %v212, %v208
        %v214 = vmul.f32 1.0, %v213
        %v215 = vmul.f32 %v190, %v214
        %216 = vst.msk [vmem:[%s169] sm:$0xff] %vm191, %v215
        %s217 = sand.u32 %s92, 1
        %s218 = scalar_lea.sflag [#allocation3], %s217
        %s219 = sand.u32 %s92, 1
        %s220 = smul.addr %s219, 8
        %s221 = scalar_lea.vmem [#allocation2], %s220
        // Predicated region
        $region29: #{tpu_custom_call.1} parent=27 // pred_check
          %p222 = pneg %p102
        $region30: #{tpu_custom_call.1} parent=27 // pred_check_branch
          %224 = sbr.rel (%p222) target = $region32
        $region31: #{tpu_custom_call.1} parent=27 // pred_region
          %226 = vsyncadd %s218, 0
          %s227 = sadd.s32 %s21, %s20
          %s228 = smul.addr %s227, 8
          %s229 = scalar_lea.hbm %s2, %s228
          %s231 = sshll.u32 %s221, 4
          %s232 = int_to_ptr.vmem [resolvable:$true] %s231
          %s233 = sshll.u32 %s229, 4
          %s234 = int_to_ptr.hbm [resolvable:$true] %s233
          %236 = dma.vmem_to_hbm [thread:$0]  %s232, 128, %s234, %s218
        $region32: #{tpu_custom_call.1} parent=27 // pred_fallthru
          _
      $region28: #{tpu_custom_call.1} parent=5 // pred_fallthru
        _
      %p237 = scmp.le.s32.totalorder 2, %s11
      // Predicated region
      $region33: #{tpu_custom_call.1} parent=5 // pred_check
        %p238 = pneg %p237
      $region34: #{tpu_custom_call.1} parent=5 // pred_check_branch
        %240 = sbr.rel (%p238) target = $region36
      $region35: #{tpu_custom_call.1} parent=5 // pred_region
        %s241 = ssub.s32 %s11, 2
        // Predicated region
        $region37: #{tpu_custom_call.1} parent=35 // pred_check
          %p242 = pneg %p108
        $region38: #{tpu_custom_call.1} parent=35 // pred_check_branch
          %244 = sbr.rel (%p242) target = $region40
        $region39: #{tpu_custom_call.1} parent=35 // pred_region
          %s245 = sand.u32 %s93, 1
          %s246 = scalar_lea.sflag [#allocation3], %s245
          %s247 = sand.u32 %s93, 1
          %s248 = smul.addr %s247, 8
          %s249 = scalar_lea.vmem [#allocation2], %s248
          %251 = dma.done %s246, 128
        $region40: #{tpu_custom_call.1} parent=35 // pred_fallthru
          _
      $region36: #{tpu_custom_call.1} parent=5 // pred_fallthru
        _
    $region6: #{tpu_custom_call.1} parent=1 // loop_footer
      %s15 = sadd.s32 1, %s11
    $region7: #{tpu_custom_call.1} parent=1 // loop_footer_branch
      %10 = sbr.rel target = $region3
    $region8: #{tpu_custom_call.1} parent=1 // loop_exit
      _
    %252 = vsyncpa [#allocation3], 1
    %s253 = scalar_lea.sflag [#allocation3], 1
    %254 = vsyncpa %s253, 1

</llo_original>
